<compile_context>
chip_gen: v7x
topology: tpu7x:2x2x1
jax: 0.10.0
libtpu: 0.0.40
codegen_flags: <defaults>
</compile_context>

<pallas_src>
import functools

import jax
import jax.numpy as jnp
from jax import lax
from jax.experimental import pallas as pl
from jax.experimental.pallas import tpu as pltpu


def _max_identity(dtype):
    """Identity element for a max reduction in the given dtype."""
    dtype = jnp.dtype(dtype)
    if jnp.issubdtype(dtype, jnp.floating):
        return dtype.type(-jnp.inf)
    if jnp.issubdtype(dtype, jnp.integer):
        return dtype.type(jnp.iinfo(dtype).min)
    raise NotImplementedError(f"unsupported dtype for max pooling: {dtype}")


def _default_block_bytes():
    """Per-input-block byte budget, sized per TPU generation (best effort)."""
    try:
        vmem = pltpu.get_tpu_info().vmem_capacity_bytes
    except Exception:
        vmem = None
    if vmem is not None and vmem <= (96 << 20):
        # v7x-class: 64 MiB VMEM but 3.2 TB/s HBM -> wants the largest blocks.
        return 12 << 20
    # v5e / v6e (128 MiB VMEM): 8 MiB blocks already sit >90% of HBM roofline.
    return 8 << 20


def _single_pass_kernel(x_ref, o_ref):
    # x_ref: (rt, st) with the full spatial extent on lanes.  The lane-axis max
    # lowers to VPU elementwise folds across lane tiles plus one cross-lane XLU
    # reduce per vreg row; kernel is HBM-bound.
    o_ref[...] = jnp.max(x_ref[...], axis=-1, keepdims=True)


def _streaming_kernel(x_ref, o_ref, acc_ref, *, st, s_total, ident, mask_tail):
    # Spatial axis tiled: grid = (row_tiles, s_tiles), spatial innermost and
    # "arbitrary".  acc_ref is a tiny (rt, 1) running max (no full-width
    # accumulator load/store per step).
    si = pl.program_id(1)
    x = x_ref[...]
    if mask_tail:  # trace-time: only emitted when s % st != 0
        col = lax.broadcasted_iota(jnp.int32, x.shape, 1)
        x = jnp.where(si * st + col < s_total, x, ident)
    blk_max = jnp.max(x, axis=-1, keepdims=True)  # (rt, 1)

    @pl.when(si == 0)
    def _():
        acc_ref[...] = blk_max

    @pl.when(si > 0)
    def _():
        acc_ref[...] = jnp.maximum(acc_ref[...], blk_max)

    @pl.when(si == pl.num_programs(1) - 1)
    def _():
        o_ref[...] = acc_ref[...]


def amp2d(x, *, block_bytes=None):
    """AdaptiveMaxPool2d((1, 1)) on NCHW input: global max over H and W."""
    n, c, h, w = x.shape
    nc, s = n * c, h * w
    dtype = x.dtype
    itemsize = jnp.dtype(dtype).itemsize
    if block_bytes is None:
        block_bytes = _default_block_bytes()

    # Free reshape: rows = flattened (N, C), lanes = flattened (H, W).
    x2 = x.reshape(nc, s)

    sub = 8  # sublane granularity for the row (second-to-last) axis
    rt_min = nc if nc < sub else sub

    if rt_min * s * itemsize <= block_bytes:
        # The whole spatial extent fits on the lane axis: single-pass reduce.
        st = s
        max_rows = block_bytes // (s * itemsize)
        rt = nc if max_rows >= nc else (max_rows // sub) * sub
        # v7x has 2 TensorCores: if everything collapsed into one grid point but
        # the data is still multi-MiB, split the row axis so both cores work.
        if rt >= nc and nc >= 2 * sub and nc * s * itemsize >= (2 << 20):
            half = -(-nc // 2)
            rt = -(-half // sub) * sub  # ~half the rows, rounded up to 8
    else:
        # Spatial too large even for the minimal row tile: tile the lane axis
        # (128-aligned so non-edge blocks stay unmasked / DMA-friendly).
        rt = rt_min
        st = max(128, (block_bytes // (rt * itemsize) // 128) * 128)

    grid_rows = pl.cdiv(nc, rt)

    # Footprint ~ 2x block (double-buffered input) + tiny scratch/output.
    vmem_limit = int(2 * rt * st * itemsize + (4 << 20))
    out_shape = jax.ShapeDtypeStruct((nc, 1), dtype)

    if st == s:
        out = pl.pallas_call(
            _single_pass_kernel,
            out_shape=out_shape,
            grid_spec=pltpu.PrefetchScalarGridSpec(
                num_scalar_prefetch=0,
                grid=(grid_rows,),
                in_specs=[pl.BlockSpec((rt, st), lambda ri: (ri, 0))],
                out_specs=pl.BlockSpec((rt, 1), lambda ri: (ri, 0)),
            ),
            compiler_params=pltpu.CompilerParams(
                dimension_semantics=("parallel",),
                vmem_limit_bytes=vmem_limit,
            ),
        )(x2)
    else:
        grid_s = pl.cdiv(s, st)
        kernel = functools.partial(
            _streaming_kernel,
            st=st,
            s_total=s,
            ident=_max_identity(dtype),
            mask_tail=(s % st) != 0,
        )
        out = pl.pallas_call(
            kernel,
            out_shape=out_shape,
            grid_spec=pltpu.PrefetchScalarGridSpec(
                num_scalar_prefetch=0,
                grid=(grid_rows, grid_s),
                in_specs=[pl.BlockSpec((rt, st), lambda ri, si: (ri, si))],
                # Constant block index along the spatial (reduction) axis ->
                # output stays resident; written only on the last spatial step.
                out_specs=pl.BlockSpec((rt, 1), lambda ri, si: (ri, 0)),
                scratch_shapes=[pltpu.VMEM((rt, 1), dtype)],
            ),
            compiler_params=pltpu.CompilerParams(
                dimension_semantics=("parallel", "arbitrary"),
                vmem_limit_bytes=vmem_limit,
            ),
        )(x2)

    # Restore the (N, C, 1, 1) PyTorch output shape (free reshape).
    return out.reshape(n, c, 1, 1)


if __name__ == "__main__":
    # 1) Primary small test (batch=2, channels=4, spatial=16x16): single block.
    x = jax.random.normal(jax.random.PRNGKey(0), (2, 4, 16, 16), dtype=jnp.float32)
    out = jax.block_until_ready(amp2d(x))
    ref = jnp.max(x, axis=(2, 3), keepdims=True)
    assert out.shape == (2, 4, 1, 1)
    assert jnp.array_equal(out, ref), "mismatch vs reference (single block)"

    # 2) Full-extent spatial axis that is not a multiple of 128 (24*24 = 576).
    x2 = jax.random.normal(jax.random.PRNGKey(1), (2, 12, 24, 24), dtype=jnp.float32)
    out2 = jax.block_until_ready(amp2d(x2))
    ref2 = jnp.max(x2, axis=(2, 3), keepdims=True)
    assert jnp.array_equal(out2, ref2), "mismatch vs reference (non-128 spatial)"

    # 3) Force the streaming path (spatial tiling + in-kernel tail masking +
    #    partial row block reads + masked partial output writes) with a tiny
    #    artificial byte budget.
    x3 = jax.random.normal(jax.random.PRNGKey(2), (2, 5, 24, 24), dtype=jnp.float32)
    out3 = jax.block_until_ready(amp2d(x3, block_bytes=8 * 1024))
    ref3 = jnp.max(x3, axis=(2, 3), keepdims=True)
    assert jnp.array_equal(out3, ref3), "mismatch vs reference (streaming path)"

    # 4) bf16 coverage (max is exact in the input dtype).
    x4 = jax.random.normal(jax.random.PRNGKey(3), (2, 4, 16, 16), dtype=jnp.bfloat16)
    out4 = jax.block_until_ready(amp2d(x4))
    ref4 = jnp.max(x4, axis=(2, 3), keepdims=True)
    assert jnp.array_equal(out4, ref4), "mismatch vs reference (bf16)"

    print("KERNEL_OK")
</pallas_src>

<mosaic_0001>
module attributes {stable_mosaic.version = 11 : i64} {
  func.func @_single_pass_kernel(%arg0: i32, %arg1: memref<8x256xf32, #tpu.memory_space<vmem>>, %arg2: memref<8x1xf32, #tpu.memory_space<vmem>>) attributes {dimension_semantics = [#tpu.dimension_semantics<parallel>], iteration_bounds = array<i64: 1>, scalar_prefetch = 0 : i64, scratch_operands = 0 : i64, tpu.core_type = #tpu.core_type<tc>, window_params = [{transform_indices = @transform_0, window_bounds = array<i64: 8, 256>}, {transform_indices = @transform_1, window_bounds = array<i64: 8, 1>}]} {
    %c0 = arith.constant 0 : index
    %c0_0 = arith.constant 0 : index
    %0 = vector.load %arg1[%c0, %c0_0] : memref<8x256xf32, #tpu.memory_space<vmem>>, vector<8x256xf32>
    %cst = arith.constant dense<0xFF800000> : vector<8xf32>
    %1 = vector.multi_reduction <maximumf>, %0, %cst [1] : vector<8x256xf32> to vector<8xf32>
    %2 = vector.shape_cast %1 : vector<8xf32> to vector<8x1xf32>
    %c0_1 = arith.constant 0 : index
    %c0_2 = arith.constant 0 : index
    %3 = vector.load %arg2[%c0_1, %c0_2] : memref<8x1xf32, #tpu.memory_space<vmem>>, vector<8x1xf32>
    tpu.vector_store %arg2[%c0_1, %c0_2], %2 {strides = array<i32>} : memref<8x1xf32, #tpu.memory_space<vmem>>, vector<8x1xf32>,
    return
  }
  func.func @transform_0(%arg0: i32) -> (i32, i32) {
    %c0_i32 = arith.constant 0 : i32
    %c0_i32_0 = arith.constant 0 : i32
    return %arg0, %c0_i32 : i32, i32
  }
  func.func @transform_1(%arg0: i32) -> (i32, i32) {
    %c0_i32 = arith.constant 0 : i32
    %c0_i32_0 = arith.constant 0 : i32
    return %arg0, %c0_i32 : i32, i32
  }
}

</mosaic_0001>

<llo_original>
// kernel: tpu_custom_call.1
$region0: #{tpu_custom_call.1}
  #allocation0 [shape = 'u32[]', space=smem, size = 0x4, offset = 0x4, fixed_abs, tag = 'smem constant byte address 0x4 - core index']
  #allocation1 [shape = 'u32[144,128]{1,0:T(1,128)}', space=vmem, size = 0x12000, scoped, tag = 'internal scratch']
  %s0 = inlined_call_operand.hbm [shape: f32[8,256], index: 0, kind: input, shape index: {}]
  %s1 = inlined_call_operand.vmem [shape: f32[8,1], index: 1, kind: output, shape index: {}]
  %s2 = sld [smem:[#allocation0]]
  $region18: #{tpu_custom_call.1} parent=0
    _
  %s4 = ssub.s32 1, %s2
  %s5 = scalar_select 0, %s4, %s2
  $region1: #{tpu_custom_call.1} parent=0
    #allocation2 [shape = 'u8[8192]{0}', space=vmem, size = 0x2000, scoped, tag = 'input window, operand 0, single buffered']
    #allocation3 [shape = 's32[1]{0}', space=sflag, size = 0x4, scoped, tag = 'scoped memory for tpu_custom_call.1']
    %6 = vsyncpa [#allocation3], 0
    // Predicated region
    $region2: #{tpu_custom_call.1} parent=1 // pred_check
      _
    $region3: #{tpu_custom_call.1} parent=1 // pred_check_branch
      %8 = sbr.rel (0) target = $region5
    $region4: #{tpu_custom_call.1} parent=1 // pred_region
      %s10 = ssub.s32 256, 256
      %11 = vsyncadd [#allocation3], %s10
      %s13 = sshll.u32 [#allocation2], 4
      %s14 = int_to_ptr.vmem [resolvable:$true] %s13
      %16 = dma.hbm_to_vmem [thread:$0]  %s0, 256, %s14, [#allocation3]
    $region5: #{tpu_custom_call.1} parent=1 // pred_fallthru
      _
    // Predicated region
    $region6: #{tpu_custom_call.1} parent=1 // pred_check
      _
    $region7: #{tpu_custom_call.1} parent=1 // pred_check_branch
      %18 = sbr.rel (0) target = $region9
    $region8: #{tpu_custom_call.1} parent=1 // pred_region
      %19 = dma.done [#allocation3], 256
    $region9: #{tpu_custom_call.1} parent=1 // pred_fallthru
      _
    %v20 = vld [vmem:[#allocation2] sm:$0xff]
    %v21 = vld [vmem:[#allocation2 + $0x8] sm:$0xff]
    %v22 = vmax.f32 %v20, %v21
    %23 = vmax.xlane.f32.xlu0 %v22
    %v24 = vpop.xlane.xlu0 %23
    %vm25 = vcmask 7168
    %26 = vst.msk [vmem:[%s1] sm:$0xff] %vm25, %v24
    // Predicated region
    $region10: #{tpu_custom_call.1} parent=1 // pred_check
      _
    $region11: #{tpu_custom_call.1} parent=1 // pred_check_branch
      %28 = sbr.rel (0) target = $region13
    $region12: #{tpu_custom_call.1} parent=1 // pred_region
      _
    $region13: #{tpu_custom_call.1} parent=1 // pred_fallthru
      _
    // Predicated region
    $region14: #{tpu_custom_call.1} parent=1 // pred_check
      _
    $region15: #{tpu_custom_call.1} parent=1 // pred_check_branch
      %30 = sbr.rel (0) target = $region17
    $region16: #{tpu_custom_call.1} parent=1 // pred_region
      _
    $region17: #{tpu_custom_call.1} parent=1 // pred_fallthru
      _
    %31 = vsyncpa [#allocation3], 1

</llo_original>
